<compile_context>
chip_gen: v7x
topology: tpu7x:2x2x1
jax: 0.10.0
libtpu: 0.0.40
codegen_flags: <defaults>
</compile_context>

<pallas_src>
import jax
import jax.numpy as jnp
from jax.experimental import pallas as pl
from jax.experimental.pallas import tpu as pltpu

_MXU_DTYPE = jnp.bfloat16

# Below this many batch rows a single full-extent tile is used (per-grid-step
# overhead ~0.35 us; splitting tiny batches is pure tax).
_MIN_ROWS_FOR_SPLIT = 256

# Probe cache: does this build accept pl.Buffered(1) (single-buffered
# resident weights) on the top-level pallas_call grid?
_SINGLE_BUFFER_OK = {"ok": None}


def _deep_svdd_kernel(x_ref, w1t_ref, b1_ref, w2t_ref, b2_ref, o_ref):
    # Cast the f32 x tile to bf16 in-register (no HBM round trip), ride the
    # bf16 MXU path, accumulate in f32.
    x_bf = x_ref[...].astype(_MXU_DTYPE)
    h = jnp.dot(x_bf, w1t_ref[...], preferred_element_type=jnp.float32)
    h = jnp.tanh(h + b1_ref[...])                 # bias + tanh in f32 (v5e-safe)
    y = jnp.dot(h.astype(w2t_ref.dtype), w2t_ref[...],
                preferred_element_type=jnp.float32)
    # TODO(synk): if the consumer tolerates bf16 scores and the profile shows
    # store-side stalls (R < 128 -> masked vst), emit a bf16 / lane-dense
    # (batch-folded) output slab instead of a [tile_b, R] f32 block.
    o_ref[...] = (y + b2_ref[...]).astype(o_ref.dtype)


def prepare_deep_svdd_params(w1, b1, w2, b2, *, compute_dtype=_MXU_DTYPE):
    """One-time weight preparation (hoisted out of the per-call wrapper).

    PyTorch nn.Linear stores weights as [out, in]; transpose to the
    lane-dense [in, out] layout, cast to the MXU compute dtype, and lift the
    biases to [1, out] f32 broadcast rows.
    """
    return {
        "w1t": jnp.transpose(w1).astype(compute_dtype),   # [D, H]
        "b1": b1.reshape(1, -1).astype(jnp.float32),      # [1, H]
        "w2t": jnp.transpose(w2).astype(compute_dtype),   # [H, R]
        "b2": b2.reshape(1, -1).astype(jnp.float32),      # [1, R]
    }


def _round_up(x, m):
    return ((x + m - 1) // m) * m


def _max_tile_b(D, H, R, in_itemsize, w_itemsize, out_itemsize,
                vmem_budget_bytes):
    """Largest 16-aligned batch tile whose VMEM working set fits the budget."""
    # Per-row VMEM bytes:
    #   x tile      : 2 (double-buffered) * D * in_itemsize
    #   x bf16 cast : D * 2
    #   h f32 + bf16: H * (4 + 2)
    #   out tile    : 2 (double-buffered) * R * out_itemsize
    per_row = 2 * D * in_itemsize + 2 * D + 6 * H + 2 * R * out_itemsize
    # Weights/biases counted double-buffered (worst case); Buffered(1) halves
    # this when supported -- that saving is treated as free headroom.
    weight_bytes = 2 * (D * H * w_itemsize + H * R * w_itemsize + (H + R) * 4)
    avail = vmem_budget_bytes - weight_bytes
    tile = max(avail // per_row, 16)
    return (tile // 16) * 16


def deep_svdd_forward(x, params, *,
                      vmem_budget_bytes=40 * 1024 * 1024,
                      vmem_limit_bytes=48 * 1024 * 1024,
                      tile_b=None):
    """Fused Deep-SVDD forward: tanh(x @ W1^T + b1) @ W2^T + b2.

    Args:
        x      : [B, D] float32 batch.
        params : output of prepare_deep_svdd_params().
    Returns:
        [B, D // 4] array in x.dtype.
    """
    w1t, b1r, w2t, b2r = params["w1t"], params["b1"], params["w2t"], params["b2"]
    B, D = x.shape
    H = w1t.shape[1]          # D // 2
    R = w2t.shape[1]          # D // 4 (rep_dim)
    out_dtype = x.dtype

    if tile_b is None:
        cap = _max_tile_b(
            D, H, R,
            in_itemsize=jnp.dtype(x.dtype).itemsize,
            w_itemsize=jnp.dtype(w1t.dtype).itemsize,
            out_itemsize=jnp.dtype(out_dtype).itemsize,
            vmem_budget_bytes=vmem_budget_bytes)
        if B <= _MIN_ROWS_FOR_SPLIT:
            tile_b = B                      # single full-extent block (legal)
        else:
            # Exact 2-way split when half the batch fits VMEM (v7x megacore),
            # otherwise the largest budget-fitting tile (grid >= 2 follows
            # automatically because B > cap).
            half = _round_up(pl.cdiv(B, 2), 16)
            tile_b = half if half <= cap else cap
    else:
        assert tile_b == B or tile_b % 8 == 0, "tile_b must be 8-aligned or == B"
    grid = (pl.cdiv(B, tile_b),)

    w_bytes = ((w1t.size + w2t.size) * jnp.dtype(w1t.dtype).itemsize
               + (b1r.size + b2r.size) * 4)
    cost = pl.CostEstimate(
        flops=2 * B * (D * H + H * R),
        transcendentals=B * H,
        bytes_accessed=(B * D * jnp.dtype(x.dtype).itemsize    # f32 x read
                        + B * R * jnp.dtype(out_dtype).itemsize  # out write
                        + w_bytes),
    )

    def _run(single_buffer_weights):
        def resident(shape):
            idx = lambda i: (0,) * len(shape)
            if single_buffer_weights:
                # Constant block index -> DMA'd once; single buffer frees VMEM.
                return pl.BlockSpec(shape, idx, pipeline_mode=pl.Buffered(1))
            return pl.BlockSpec(shape, idx)

        return pl.pallas_call(
            _deep_svdd_kernel,
            out_shape=jax.ShapeDtypeStruct((B, R), out_dtype),
            grid_spec=pltpu.PrefetchScalarGridSpec(
                num_scalar_prefetch=0,
                grid=grid,
                in_specs=[
                    pl.BlockSpec((tile_b, D), lambda i: (i, 0)),  # x: streamed
                    resident((D, H)),                             # W1^T
                    resident((1, H)),                             # b1
                    resident((H, R)),                             # W2^T
                    resident((1, R)),                             # b2
                ],
                out_specs=pl.BlockSpec((tile_b, R), lambda i: (i, 0)),
            ),
            compiler_params=pltpu.CompilerParams(
                dimension_semantics=("parallel",),   # megacore split on v7x
                vmem_limit_bytes=vmem_limit_bytes,
            ),
            cost_estimate=cost,
        )(x, w1t, b1r, w2t, b2r)

    if _SINGLE_BUFFER_OK["ok"] is None:
        try:
            out = _run(True)
            _SINGLE_BUFFER_OK["ok"] = True
            return out
        except Exception:
            _SINGLE_BUFFER_OK["ok"] = False
            return _run(False)
    return _run(_SINGLE_BUFFER_OK["ok"])


# ----------------------------- test harness ------------------------------- #

def _init_linear(key, out_features, in_features):
    """Deterministic init mimicking nn.Linear default (uniform +/- 1/sqrt(in))."""
    kw, kb = jax.random.split(key)
    bound = 1.0 / jnp.sqrt(jnp.float32(in_features))
    w = jax.random.uniform(kw, (out_features, in_features),
                           minval=-bound, maxval=bound, dtype=jnp.float32)
    b = jax.random.uniform(kb, (out_features,),
                           minval=-bound, maxval=bound, dtype=jnp.float32)
    return w, b


def _ref_f32(x, w1, b1, w2, b2):
    return jnp.tanh(x @ w1.T + b1) @ w2.T + b2


def _ref_bf16(x, w1, b1, w2, b2):
    """Reference with the same bf16-quantized matmul operands as the kernel."""
    xc = x.astype(jnp.bfloat16)
    w1t = w1.T.astype(jnp.bfloat16)
    w2t = w2.T.astype(jnp.bfloat16)
    h = jnp.tanh(jnp.dot(xc, w1t, preferred_element_type=jnp.float32) + b1)
    return jnp.dot(h.astype(jnp.bfloat16), w2t,
                   preferred_element_type=jnp.float32) + b2


if __name__ == "__main__":
    # Small shapes consistent with the module: diameter D, input [B, D].
    B = 8
    D = 32                      # diameter
    H = D // 2                  # hidden width
    R = D // 4                  # rep_dim

    key = jax.random.PRNGKey(0)
    kx, k1, k2, kx2 = jax.random.split(key, 4)

    x = jax.random.normal(kx, (B, D), dtype=jnp.float32)
    w1, b1 = _init_linear(k1, H, D)
    w2, b2 = _init_linear(k2, R, H)
    params = prepare_deep_svdd_params(w1, b1, w2, b2)   # one-time weight prep

    out = jax.block_until_ready(deep_svdd_forward(x, params))
    assert out.shape == (B, R)
    assert jnp.allclose(out, _ref_bf16(x, w1, b1, w2, b2), atol=5e-3, rtol=5e-3)
    assert jnp.allclose(out, _ref_f32(x, w1, b1, w2, b2), atol=3e-2, rtol=3e-2)

    # Gridded / ragged-batch path: B2 > _MIN_ROWS_FOR_SPLIT -> >= 2 grid steps
    # (2-way megacore split), last tile padded.
    B2 = 300
    x2 = jax.random.normal(kx2, (B2, D), dtype=jnp.float32)
    out2 = jax.block_until_ready(deep_svdd_forward(x2, params))
    assert out2.shape == (B2, R)
    assert jnp.allclose(out2, _ref_bf16(x2, w1, b1, w2, b2), atol=5e-3, rtol=5e-3)
    assert jnp.allclose(out2, _ref_f32(x2, w1, b1, w2, b2), atol=3e-2, rtol=3e-2)

    # Explicit small-tile override to exercise a deeper grid; must match the
    # 2-step result exactly (batch tiling does not change per-row math).
    out3 = jax.block_until_ready(deep_svdd_forward(x2, params, tile_b=64))
    assert jnp.allclose(out3, out2, atol=1e-6, rtol=1e-6)

    print("KERNEL_OK")
</pallas_src>

<mosaic_0001>
module attributes {stable_mosaic.version = 11 : i64} {
  func.func @_deep_svdd_kernel(%arg0: i32, %arg1: memref<8x32xf32, #tpu.memory_space<vmem>>, %arg2: memref<32x16xbf16, #tpu.memory_space<vmem>>, %arg3: memref<1x16xf32, #tpu.memory_space<vmem>>, %arg4: memref<16x8xbf16, #tpu.memory_space<vmem>>, %arg5: memref<1x8xf32, #tpu.memory_space<vmem>>, %arg6: memref<8x8xf32, #tpu.memory_space<vmem>>) attributes {dimension_semantics = [#tpu.dimension_semantics<parallel>], iteration_bounds = array<i64: 1>, scalar_prefetch = 0 : i64, scratch_operands = 0 : i64, tpu.core_type = #tpu.core_type<tc>, window_params = [{transform_indices = @transform_0, window_bounds = array<i64: 8, 32>}, {pipeline_mode = #tpu.pipeline_mode<synchronous>, transform_indices = @transform_1, window_bounds = array<i64: 32, 16>}, {pipeline_mode = #tpu.pipeline_mode<synchronous>, transform_indices = @transform_2, window_bounds = array<i64: 1, 16>}, {pipeline_mode = #tpu.pipeline_mode<synchronous>, transform_indices = @transform_3, window_bounds = array<i64: 16, 8>}, {pipeline_mode = #tpu.pipeline_mode<synchronous>, transform_indices = @transform_4, window_bounds = array<i64: 1, 8>}, {transform_indices = @transform_5, window_bounds = array<i64: 8, 8>}]} {
    %c0 = arith.constant 0 : index
    %c0_0 = arith.constant 0 : index
    %0 = vector.load %arg1[%c0, %c0_0] : memref<8x32xf32, #tpu.memory_space<vmem>>, vector<8x32xf32>
    %1 = arith.truncf %0 : vector<8x32xf32> to vector<8x32xbf16>
    %c0_1 = arith.constant 0 : index
    %c0_2 = arith.constant 0 : index
    %2 = vector.load %arg2[%c0_1, %c0_2] : memref<32x16xbf16, #tpu.memory_space<vmem>>, vector<32x16xbf16>
    %cst = arith.constant dense<0.000000e+00> : vector<8x16xf32>
    %3 = tpu.matmul %1, %2, %cst {dimension_numbers = #tpu.dot_dimension_numbers<[1], [0], [0], [1], [0, 0, 1, 1], [], []>} : vector<8x32xbf16>, vector<32x16xbf16>, vector<8x16xf32> -> vector<8x16xf32>
    %c0_3 = arith.constant 0 : index
    %c0_4 = arith.constant 0 : index
    %4 = vector.load %arg3[%c0_3, %c0_4] : memref<1x16xf32, #tpu.memory_space<vmem>>, vector<1x16xf32>
    %5 = vector.broadcast %4 : vector<1x16xf32> to vector<8x16xf32>
    %6 = arith.addf %3, %5 : vector<8x16xf32>
    %7 = math.tanh %6 : vector<8x16xf32>
    %8 = arith.truncf %7 : vector<8x16xf32> to vector<8x16xbf16>
    %c0_5 = arith.constant 0 : index
    %c0_6 = arith.constant 0 : index
    %9 = vector.load %arg4[%c0_5, %c0_6] : memref<16x8xbf16, #tpu.memory_space<vmem>>, vector<16x8xbf16>
    %cst_7 = arith.constant dense<0.000000e+00> : vector<8x8xf32>
    %10 = tpu.matmul %8, %9, %cst_7 {dimension_numbers = #tpu.dot_dimension_numbers<[1], [0], [0], [1], [0, 0, 1, 1], [], []>} : vector<8x16xbf16>, vector<16x8xbf16>, vector<8x8xf32> -> vector<8x8xf32>
    %c0_8 = arith.constant 0 : index
    %c0_9 = arith.constant 0 : index
    %11 = vector.load %arg5[%c0_8, %c0_9] : memref<1x8xf32, #tpu.memory_space<vmem>>, vector<1x8xf32>
    %12 = vector.broadcast %11 : vector<1x8xf32> to vector<8x8xf32>
    %13 = arith.addf %10, %12 : vector<8x8xf32>
    %c0_10 = arith.constant 0 : index
    %c0_11 = arith.constant 0 : index
    %14 = vector.load %arg6[%c0_10, %c0_11] : memref<8x8xf32, #tpu.memory_space<vmem>>, vector<8x8xf32>
    tpu.vector_store %arg6[%c0_10, %c0_11], %13 {strides = array<i32>} : memref<8x8xf32, #tpu.memory_space<vmem>>, vector<8x8xf32>,
    return
  }
  func.func @transform_0(%arg0: i32) -> (i32, i32) {
    %c0_i32 = arith.constant 0 : i32
    %c0_i32_0 = arith.constant 0 : i32
    return %arg0, %c0_i32 : i32, i32
  }
  func.func @transform_1(%arg0: i32) -> (i32, i32) {
    %c0_i32 = arith.constant 0 : i32
    %c0_i32_0 = arith.constant 0 : i32
    %c0_i32_1 = arith.constant 0 : i32
    return %c0_i32, %c0_i32_0 : i32, i32
  }
  func.func @transform_2(%arg0: i32) -> (i32, i32) {
    %c0_i32 = arith.constant 0 : i32
    %c0_i32_0 = arith.constant 0 : i32
    %c0_i32_1 = arith.constant 0 : i32
    return %c0_i32, %c0_i32_0 : i32, i32
  }
  func.func @transform_3(%arg0: i32) -> (i32, i32) {
    %c0_i32 = arith.constant 0 : i32
    %c0_i32_0 = arith.constant 0 : i32
    %c0_i32_1 = arith.constant 0 : i32
    return %c0_i32, %c0_i32_0 : i32, i32
  }
  func.func @transform_4(%arg0: i32) -> (i32, i32) {
    %c0_i32 = arith.constant 0 : i32
    %c0_i32_0 = arith.constant 0 : i32
    %c0_i32_1 = arith.constant 0 : i32
    return %c0_i32, %c0_i32_0 : i32, i32
  }
  func.func @transform_5(%arg0: i32) -> (i32, i32) {
    %c0_i32 = arith.constant 0 : i32
    %c0_i32_0 = arith.constant 0 : i32
    return %arg0, %c0_i32 : i32, i32
  }
}

module attributes {stable_mosaic.version = 11 : i64} {
  func.func @_deep_svdd_kernel(%arg0: i32, %arg1: memref<8x32xf32, #tpu.memory_space<vmem>>, %arg2: memref<32x16xbf16, #tpu.memory_space<vmem>>, %arg3: memref<1x16xf32, #tpu.memory_space<vmem>>, %arg4: memref<16x8xbf16, #tpu.memory_space<vmem>>, %arg5: memref<1x8xf32, #tpu.memory_space<vmem>>, %arg6: memref<8x8xf32, #tpu.memory_space<vmem>>) attributes {dimension_semantics = [#tpu.dimension_semantics<parallel>], iteration_bounds = array<i64: 1>, scalar_prefetch = 0 : i64, scratch_operands = 0 : i64, tpu.core_type = #tpu.core_type<tc>, window_params = [{transform_indices = @transform_0, window_bounds = array<i64: 8, 32>}, {pipeline_mode = #tpu.pipeline_mode<synchronous>, transform_indices = @transform_1, window_bounds = array<i64: 32, 16>}, {pipeline_mode = #tpu.pipeline_mode<synchronous>, transform_indices = @transform_2, window_bounds = array<i64: 1, 16>}, {pipeline_mode = #tpu.pipeline_mode<synchronous>, transform_indices = @transform_3, window_bounds = array<i64: 16, 8>}, {pipeline_mode = #tpu.pipeline_mode<synchronous>, transform_indices = @transform_4, window_bounds = array<i64: 1, 8>}, {transform_indices = @transform_5, window_bounds = array<i64: 8, 8>}]} {
    %c0 = arith.constant 0 : index
    %c0_0 = arith.constant 0 : index
    %0 = vector.load %arg1[%c0, %c0_0] : memref<8x32xf32, #tpu.memory_space<vmem>>, vector<8x32xf32>
    %1 = arith.truncf %0 : vector<8x32xf32> to vector<8x32xbf16>
    %c0_1 = arith.constant 0 : index
    %c0_2 = arith.constant 0 : index
    %2 = vector.load %arg2[%c0_1, %c0_2] : memref<32x16xbf16, #tpu.memory_space<vmem>>, vector<32x16xbf16>
    %cst = arith.constant dense<0.000000e+00> : vector<8x16xf32>
    %3 = tpu.matmul %1, %2, %cst {dimension_numbers = #tpu.dot_dimension_numbers<[1], [0], [0], [1], [0, 0, 1, 1], [], []>} : vector<8x32xbf16>, vector<32x16xbf16>, vector<8x16xf32> -> vector<8x16xf32>
    %c0_3 = arith.constant 0 : index
    %c0_4 = arith.constant 0 : index
    %4 = vector.load %arg3[%c0_3, %c0_4] : memref<1x16xf32, #tpu.memory_space<vmem>>, vector<1x16xf32>
    %5 = vector.broadcast %4 : vector<1x16xf32> to vector<8x16xf32>
    %6 = arith.addf %3, %5 : vector<8x16xf32>
    %7 = math.tanh %6 : vector<8x16xf32>
    %8 = arith.truncf %7 : vector<8x16xf32> to vector<8x16xbf16>
    %c0_5 = arith.constant 0 : index
    %c0_6 = arith.constant 0 : index
    %9 = vector.load %arg4[%c0_5, %c0_6] : memref<16x8xbf16, #tpu.memory_space<vmem>>, vector<16x8xbf16>
    %cst_7 = arith.constant dense<0.000000e+00> : vector<8x8xf32>
    %10 = tpu.matmul %8, %9, %cst_7 {dimension_numbers = #tpu.dot_dimension_numbers<[1], [0], [0], [1], [0, 0, 1, 1], [], []>} : vector<8x16xbf16>, vector<16x8xbf16>, vector<8x8xf32> -> vector<8x8xf32>
    %c0_8 = arith.constant 0 : index
    %c0_9 = arith.constant 0 : index
    %11 = vector.load %arg5[%c0_8, %c0_9] : memref<1x8xf32, #tpu.memory_space<vmem>>, vector<1x8xf32>
    %12 = vector.broadcast %11 : vector<1x8xf32> to vector<8x8xf32>
    %13 = arith.addf %10, %12 : vector<8x8xf32>
    %c0_10 = arith.constant 0 : index
    %c0_11 = arith.constant 0 : index
    %14 = vector.load %arg6[%c0_10, %c0_11] : memref<8x8xf32, #tpu.memory_space<vmem>>, vector<8x8xf32>
    tpu.vector_store %arg6[%c0_10, %c0_11], %13 {strides = array<i32>} : memref<8x8xf32, #tpu.memory_space<vmem>>, vector<8x8xf32>,
    return
  }
  func.func @transform_0(%arg0: i32) -> (i32, i32) {
    %c0_i32 = arith.constant 0 : i32
    %c0_i32_0 = arith.constant 0 : i32
    return %arg0, %c0_i32 : i32, i32
  }
  func.func @transform_1(%arg0: i32) -> (i32, i32) {
    %c0_i32 = arith.constant 0 : i32
    %c0_i32_0 = arith.constant 0 : i32
    %c0_i32_1 = arith.constant 0 : i32
    return %c0_i32, %c0_i32_0 : i32, i32
  }
  func.func @transform_2(%arg0: i32) -> (i32, i32) {
    %c0_i32 = arith.constant 0 : i32
    %c0_i32_0 = arith.constant 0 : i32
    %c0_i32_1 = arith.constant 0 : i32
    return %c0_i32, %c0_i32_0 : i32, i32
  }
  func.func @transform_3(%arg0: i32) -> (i32, i32) {
    %c0_i32 = arith.constant 0 : i32
    %c0_i32_0 = arith.constant 0 : i32
    %c0_i32_1 = arith.constant 0 : i32
    return %c0_i32, %c0_i32_0 : i32, i32
  }
  func.func @transform_4(%arg0: i32) -> (i32, i32) {
    %c0_i32 = arith.constant 0 : i32
    %c0_i32_0 = arith.constant 0 : i32
    %c0_i32_1 = arith.constant 0 : i32
    return %c0_i32, %c0_i32_0 : i32, i32
  }
  func.func @transform_5(%arg0: i32) -> (i32, i32) {
    %c0_i32 = arith.constant 0 : i32
    %c0_i32_0 = arith.constant 0 : i32
    return %arg0, %c0_i32 : i32, i32
  }
}

</mosaic_0001>

<llo_original>
// kernel: tpu_custom_call.1
$region0: #{tpu_custom_call.1}
  #allocation0 [shape = 'u32[]', space=smem, size = 0x4, offset = 0x4, fixed_abs, tag = 'smem constant byte address 0x4 - core index']
  #allocation1 [shape = 'u32[144,128]{1,0:T(1,128)}', space=vmem, size = 0x12000, scoped, tag = 'internal scratch']
  %s0 = inlined_call_operand.vmem [shape: f32[8,32], index: 0, kind: input, shape index: {}]
  %s1 = inlined_call_operand.vmem [shape: bf16[32,16], index: 1, kind: input, shape index: {}]
  %s2 = inlined_call_operand.vmem [shape: f32[1,16], index: 2, kind: input, shape index: {}]
  %s3 = inlined_call_operand.vmem [shape: bf16[16,8], index: 3, kind: input, shape index: {}]
  %s4 = inlined_call_operand.vmem [shape: f32[1,8], index: 4, kind: input, shape index: {}]
  %s5 = inlined_call_operand.hbm [shape: f32[8,8], index: 5, kind: output, shape index: {}]
  %s6 = sld [smem:[#allocation0]]
  $region30: #{tpu_custom_call.1} parent=0
    _
  %s8 = ssub.s32 1, %s6
  %s9 = scalar_select 0, %s8, %s6
  $region1: #{tpu_custom_call.1} parent=0
    #allocation2 [shape = 'u8[4096]{0}', space=vmem, size = 0x1000, scoped, tag = 'output window, operand 0, single buffered']
    #allocation3 [shape = 's32[1]{0}', space=sflag, size = 0x4, scoped, tag = 'scoped memory for tpu_custom_call.1']
    %10 = vsyncpa [#allocation3], 0
    // Predicated region
    $region2: #{tpu_custom_call.1} parent=1 // pred_check
      _
    $region3: #{tpu_custom_call.1} parent=1 // pred_check_branch
      %12 = sbr.rel (0) target = $region5
    $region4: #{tpu_custom_call.1} parent=1 // pred_region
      _
    $region5: #{tpu_custom_call.1} parent=1 // pred_fallthru
      _
    // Predicated region
    $region6: #{tpu_custom_call.1} parent=1 // pred_check
      _
    $region7: #{tpu_custom_call.1} parent=1 // pred_check_branch
      %14 = sbr.rel (0) target = $region9
    $region8: #{tpu_custom_call.1} parent=1 // pred_region
      _
    $region9: #{tpu_custom_call.1} parent=1 // pred_fallthru
      _
    // Predicated region
    $region10: #{tpu_custom_call.1} parent=1 // pred_check
      _
    $region11: #{tpu_custom_call.1} parent=1 // pred_check_branch
      %16 = sbr.rel (0) target = $region13
    $region12: #{tpu_custom_call.1} parent=1 // pred_region
      _
    $region13: #{tpu_custom_call.1} parent=1 // pred_fallthru
      _
    // Predicated region
    $region14: #{tpu_custom_call.1} parent=1 // pred_check
      _
    $region15: #{tpu_custom_call.1} parent=1 // pred_check_branch
      %18 = sbr.rel (0) target = $region17
    $region16: #{tpu_custom_call.1} parent=1 // pred_region
      _
    $region17: #{tpu_custom_call.1} parent=1 // pred_fallthru
      _
    // Predicated region
    $region18: #{tpu_custom_call.1} parent=1 // pred_check
      _
    $region19: #{tpu_custom_call.1} parent=1 // pred_check_branch
      %20 = sbr.rel (0) target = $region21
    $region20: #{tpu_custom_call.1} parent=1 // pred_region
      _
    $region21: #{tpu_custom_call.1} parent=1 // pred_fallthru
      _
    %v22 = vld [vmem:[%s0] sm:$0xff]
    %v23 = vpack.c.bf16 %v22, %v22
    %v24 = vld [vmem:[%s1] sm:$0xf]
    %v25 = vld [vmem:[%s1 + $0x4] sm:$0xf]
    %v26 = vld [vmem:[%s1 + $0x8] sm:$0xf]
    %v27 = vld [vmem:[%s1 + $0xc] sm:$0xf]
    %v28 = vld [vmem:[%s2] sm:$0x1]
    %v30 = vlaneseq
    %v31 = vshrl.u32 %v30, 7
    %v32 = vsub.s32 0, %v31
    %v33 = vrot.slane %v28, %v32
    %v39 = vunpack.c.l.b16 %v24
    %v40 = vunpack.c.l.b16 %v25
    %v41 = vunpack.c.l.b16 %v26
    %v42 = vunpack.c.l.b16 %v27
    %v43 = vpack.c.b16 %v40, %v39
    %v44 = vpack.c.b16 %v42, %v41
    %vm47 = vcmask 261120
    %v49 = vsel %vm47, %v23, 0
    %51 = vmatprep.subr.bf16.mxu0 0
    %52 = vmatpush1.bf16.msra.mxu0 %v43
    %53 = vmatprep.subr.bf16.mxu0 0
    %54 = vmatpush1.bf16.msra.mxu0 %v44
    %55 = vmatprep.subr.bf16.mxu0 0
    %56 = vmatpush1.bf16.msra.mxu0 0
    %57 = vmatprep.subr.bf16.mxu0 0
    %58 = vmatpush1.bf16.msra.mxu0 0
    %59 = vmatprep.subr.bf16.mxu0 0
    %60 = vmatpush1.bf16.msra.mxu0 0
    %61 = vmatprep.subr.bf16.mxu0 0
    %62 = vmatpush1.bf16.msra.mxu0 0
    %63 = vmatprep.subr.bf16.mxu0 0
    %64 = vmatpush1.bf16.msra.mxu0 0
    %65 = vmatprep.subr.bf16.mxu0 0
    %66 = vmatpush1.bf16.msra.mxu0 0
    %67 = vmatprep.subr.bf16.mxu0 0
    %68 = vmatpush1.bf16.msra.mxu0 0
    %69 = vmatprep.subr.bf16.mxu0 0
    %70 = vmatpush1.bf16.msra.mxu0 0
    %71 = vmatprep.subr.bf16.mxu0 0
    %72 = vmatpush1.bf16.msra.mxu0 0
    %73 = vmatprep.subr.bf16.mxu0 0
    %74 = vmatpush1.bf16.msra.mxu0 0
    %75 = vmatprep.subr.bf16.mxu0 0
    %76 = vmatpush1.bf16.msra.mxu0 0
    %77 = vmatprep.subr.bf16.mxu0 0
    %78 = vmatpush1.bf16.msra.mxu0 0
    %79 = vmatprep.subr.bf16.mxu0 0
    %80 = vmatpush1.bf16.msra.mxu0 0
    %81 = vmatprep.subr.bf16.mxu0 0
    %82 = vmatpush1.bf16.msra.mxu0 0
    %83 = vmatprep.mubr.bf16.mxu0 0
    %84 = vmatmul.mubr.bf16.gmra.mrb[0].mxu0 %v49
    %v85 = vpop.f32.mrb[0].mxu0
    %v86 = vadd.f32 %v33, %v85
    %v87 = vpop.f32.mrb[0].mxu0
    %v88 = vpop.f32.mrb[0].mxu0
    %v89 = vpop.f32.mrb[0].mxu0
    %90 = vdwg.mxu0
    %v91 = vtanh.pop %v86
    %v92 = vpack.c.bf16 %v91, %v91
    %v93 = vld [vmem:[%s3] sm:$0xf]
    %v94 = vld [vmem:[%s3 + $0x4] sm:$0xf]
    %v95 = vld [vmem:[%s4] sm:$0x1]
    %v97 = vlaneseq
    %v98 = vshrl.u32 %v97, 7
    %v99 = vsub.s32 0, %v98
    %v100 = vrot.slane %v95, %v99
    %v104 = vunpack.c.l.b16 %v93
    %v105 = vunpack.c.l.b16 %v94
    %v106 = vpack.c.b16 %v105, %v104
    %vm108 = vcmask 130048
    %v110 = vsel %vm108, %v92, 0
    %112 = vmatprep.subr.bf16.mxu0 0
    %113 = vmatpush1.bf16.msra.mxu0 %v106
    %114 = vmatprep.subr.bf16.mxu0 0
    %115 = vmatpush1.bf16.msra.mxu0 0
    %116 = vmatprep.subr.bf16.mxu0 0
    %117 = vmatpush1.bf16.msra.mxu0 0
    %118 = vmatprep.subr.bf16.mxu0 0
    %119 = vmatpush1.bf16.msra.mxu0 0
    %120 = vmatprep.subr.bf16.mxu0 0
    %121 = vmatpush1.bf16.msra.mxu0 0
    %122 = vmatprep.subr.bf16.mxu0 0
    %123 = vmatpush1.bf16.msra.mxu0 0
    %124 = vmatprep.subr.bf16.mxu0 0
    %125 = vmatpush1.bf16.msra.mxu0 0
    %126 = vmatprep.subr.bf16.mxu0 0
    %127 = vmatpush1.bf16.msra.mxu0 0
    %128 = vmatprep.subr.bf16.mxu0 0
    %129 = vmatpush1.bf16.msra.mxu0 0
    %130 = vmatprep.subr.bf16.mxu0 0
    %131 = vmatpush1.bf16.msra.mxu0 0
    %132 = vmatprep.subr.bf16.mxu0 0
    %133 = vmatpush1.bf16.msra.mxu0 0
    %134 = vmatprep.subr.bf16.mxu0 0
    %135 = vmatpush1.bf16.msra.mxu0 0
    %136 = vmatprep.subr.bf16.mxu0 0
    %137 = vmatpush1.bf16.msra.mxu0 0
    %138 = vmatprep.subr.bf16.mxu0 0
    %139 = vmatpush1.bf16.msra.mxu0 0
    %140 = vmatprep.subr.bf16.mxu0 0
    %141 = vmatpush1.bf16.msra.mxu0 0
    %142 = vmatprep.subr.bf16.mxu0 0
    %143 = vmatpush1.bf16.msra.mxu0 0
    %144 = vmatprep.mubr.bf16.mxu0 0
    %145 = vmatmul.mubr.bf16.gmra.mrb[0].mxu0 %v110
    %v146 = vpop.f32.mrb[0].mxu0
    %v147 = vadd.f32 %v100, %v146
    %v148 = vpop.f32.mrb[0].mxu0
    %v149 = vpop.f32.mrb[0].mxu0
    %v150 = vpop.f32.mrb[0].mxu0
    %151 = vdwg.mxu0
    %vm152 = vcmask 64512
    %153 = vst.msk [vmem:[#allocation2] sm:$0xff] %vm152, %v147
    // Predicated region
    $region22: #{tpu_custom_call.1} parent=1 // pred_check
      _
    $region23: #{tpu_custom_call.1} parent=1 // pred_check_branch
      %155 = sbr.rel (0) target = $region25
    $region24: #{tpu_custom_call.1} parent=1 // pred_region
      %s157 = ssub.s32 128, 128
      %158 = vsyncadd [#allocation3], %s157
      %s160 = sshll.u32 [#allocation2], 4
      %s161 = int_to_ptr.vmem [resolvable:$true] %s160
      %163 = dma.vmem_to_hbm [thread:$0]  %s161, 128, %s5, [#allocation3]
    $region25: #{tpu_custom_call.1} parent=1 // pred_fallthru
      _
    // Predicated region
    $region26: #{tpu_custom_call.1} parent=1 // pred_check
      _
    $region27: #{tpu_custom_call.1} parent=1 // pred_check_branch
      %165 = sbr.rel (0) target = $region29
    $region28: #{tpu_custom_call.1} parent=1 // pred_region
      %166 = dma.done [#allocation3], 128
    $region29: #{tpu_custom_call.1} parent=1 // pred_fallthru
      _
    %167 = vsyncpa [#allocation3], 1

// kernel: tpu_custom_call.1
$region0: #{tpu_custom_call.1}
  #allocation0 [shape = 'u32[]', space=smem, size = 0x4, offset = 0x4, fixed_abs, tag = 'smem constant byte address 0x4 - core index']
  #allocation1 [shape = 'u32[144,128]{1,0:T(1,128)}', space=vmem, size = 0x12000, scoped, tag = 'internal scratch']
  %s0 = inlined_call_operand.vmem [shape: f32[8,32], index: 0, kind: input, shape index: {}]
  %s1 = inlined_call_operand.vmem [shape: bf16[32,16], index: 1, kind: input, shape index: {}]
  %s2 = inlined_call_operand.vmem [shape: f32[1,16], index: 2, kind: input, shape index: {}]
  %s3 = inlined_call_operand.vmem [shape: bf16[16,8], index: 3, kind: input, shape index: {}]
  %s4 = inlined_call_operand.vmem [shape: f32[1,8], index: 4, kind: input, shape index: {}]
  %s5 = inlined_call_operand.hbm [shape: f32[8,8], index: 5, kind: output, shape index: {}]
  %s6 = sld [smem:[#allocation0]]
  $region30: #{tpu_custom_call.1} parent=0
    _
  %s8 = ssub.s32 1, %s6
  %s9 = scalar_select 0, %s8, %s6
  $region1: #{tpu_custom_call.1} parent=0
    #allocation2 [shape = 'u8[4096]{0}', space=vmem, size = 0x1000, scoped, tag = 'output window, operand 0, single buffered']
    #allocation3 [shape = 's32[1]{0}', space=sflag, size = 0x4, scoped, tag = 'scoped memory for tpu_custom_call.1']
    %10 = vsyncpa [#allocation3], 0
    // Predicated region
    $region2: #{tpu_custom_call.1} parent=1 // pred_check
      _
    $region3: #{tpu_custom_call.1} parent=1 // pred_check_branch
      %12 = sbr.rel (0) target = $region5
    $region4: #{tpu_custom_call.1} parent=1 // pred_region
      _
    $region5: #{tpu_custom_call.1} parent=1 // pred_fallthru
      _
    // Predicated region
    $region6: #{tpu_custom_call.1} parent=1 // pred_check
      _
    $region7: #{tpu_custom_call.1} parent=1 // pred_check_branch
      %14 = sbr.rel (0) target = $region9
    $region8: #{tpu_custom_call.1} parent=1 // pred_region
      _
    $region9: #{tpu_custom_call.1} parent=1 // pred_fallthru
      _
    // Predicated region
    $region10: #{tpu_custom_call.1} parent=1 // pred_check
      _
    $region11: #{tpu_custom_call.1} parent=1 // pred_check_branch
      %16 = sbr.rel (0) target = $region13
    $region12: #{tpu_custom_call.1} parent=1 // pred_region
      _
    $region13: #{tpu_custom_call.1} parent=1 // pred_fallthru
      _
    // Predicated region
    $region14: #{tpu_custom_call.1} parent=1 // pred_check
      _
    $region15: #{tpu_custom_call.1} parent=1 // pred_check_branch
      %18 = sbr.rel (0) target = $region17
    $region16: #{tpu_custom_call.1} parent=1 // pred_region
      _
    $region17: #{tpu_custom_call.1} parent=1 // pred_fallthru
      _
    // Predicated region
    $region18: #{tpu_custom_call.1} parent=1 // pred_check
      _
    $region19: #{tpu_custom_call.1} parent=1 // pred_check_branch
      %20 = sbr.rel (0) target = $region21
    $region20: #{tpu_custom_call.1} parent=1 // pred_region
      _
    $region21: #{tpu_custom_call.1} parent=1 // pred_fallthru
      _
    %v22 = vld [vmem:[%s0] sm:$0xff]
    %v23 = vpack.c.bf16 %v22, %v22
    %v24 = vld [vmem:[%s1] sm:$0xf]
    %v25 = vld [vmem:[%s1 + $0x4] sm:$0xf]
    %v26 = vld [vmem:[%s1 + $0x8] sm:$0xf]
    %v27 = vld [vmem:[%s1 + $0xc] sm:$0xf]
    %v28 = vld [vmem:[%s2] sm:$0x1]
    %v30 = vlaneseq
    %v31 = vshrl.u32 %v30, 7
    %v32 = vsub.s32 0, %v31
    %v33 = vrot.slane %v28, %v32
    %v39 = vunpack.c.l.b16 %v24
    %v40 = vunpack.c.l.b16 %v25
    %v41 = vunpack.c.l.b16 %v26
    %v42 = vunpack.c.l.b16 %v27
    %v43 = vpack.c.b16 %v40, %v39
    %v44 = vpack.c.b16 %v42, %v41
    %vm47 = vcmask 261120
    %v49 = vsel %vm47, %v23, 0
    %51 = vmatprep.subr.bf16.mxu0 0
    %52 = vmatpush1.bf16.msra.mxu0 %v43
    %53 = vmatprep.subr.bf16.mxu0 0
    %54 = vmatpush1.bf16.msra.mxu0 %v44
    %55 = vmatprep.subr.bf16.mxu0 0
    %56 = vmatpush1.bf16.msra.mxu0 0
    %57 = vmatprep.subr.bf16.mxu0 0
    %58 = vmatpush1.bf16.msra.mxu0 0
    %59 = vmatprep.subr.bf16.mxu0 0
    %60 = vmatpush1.bf16.msra.mxu0 0
    %61 = vmatprep.subr.bf16.mxu0 0
    %62 = vmatpush1.bf16.msra.mxu0 0
    %63 = vmatprep.subr.bf16.mxu0 0
    %64 = vmatpush1.bf16.msra.mxu0 0
    %65 = vmatprep.subr.bf16.mxu0 0
    %66 = vmatpush1.bf16.msra.mxu0 0
    %67 = vmatprep.subr.bf16.mxu0 0
    %68 = vmatpush1.bf16.msra.mxu0 0
    %69 = vmatprep.subr.bf16.mxu0 0
    %70 = vmatpush1.bf16.msra.mxu0 0
    %71 = vmatprep.subr.bf16.mxu0 0
    %72 = vmatpush1.bf16.msra.mxu0 0
    %73 = vmatprep.subr.bf16.mxu0 0
    %74 = vmatpush1.bf16.msra.mxu0 0
    %75 = vmatprep.subr.bf16.mxu0 0
    %76 = vmatpush1.bf16.msra.mxu0 0
    %77 = vmatprep.subr.bf16.mxu0 0
    %78 = vmatpush1.bf16.msra.mxu0 0
    %79 = vmatprep.subr.bf16.mxu0 0
    %80 = vmatpush1.bf16.msra.mxu0 0
    %81 = vmatprep.subr.bf16.mxu0 0
    %82 = vmatpush1.bf16.msra.mxu0 0
    %83 = vmatprep.mubr.bf16.mxu0 0
    %84 = vmatmul.mubr.bf16.gmra.mrb[0].mxu0 %v49
    %v85 = vpop.f32.mrb[0].mxu0
    %v86 = vadd.f32 %v33, %v85
    %v87 = vpop.f32.mrb[0].mxu0
    %v88 = vpop.f32.mrb[0].mxu0
    %v89 = vpop.f32.mrb[0].mxu0
    %90 = vdwg.mxu0
    %v91 = vtanh.pop %v86
    %v92 = vpack.c.bf16 %v91, %v91
    %v93 = vld [vmem:[%s3] sm:$0xf]
    %v94 = vld [vmem:[%s3 + $0x4] sm:$0xf]
    %v95 = vld [vmem:[%s4] sm:$0x1]
    %v97 = vlaneseq
    %v98 = vshrl.u32 %v97, 7
    %v99 = vsub.s32 0, %v98
    %v100 = vrot.slane %v95, %v99
    %v104 = vunpack.c.l.b16 %v93
    %v105 = vunpack.c.l.b16 %v94
    %v106 = vpack.c.b16 %v105, %v104
    %vm108 = vcmask 130048
    %v110 = vsel %vm108, %v92, 0
    %112 = vmatprep.subr.bf16.mxu0 0
    %113 = vmatpush1.bf16.msra.mxu0 %v106
    %114 = vmatprep.subr.bf16.mxu0 0
    %115 = vmatpush1.bf16.msra.mxu0 0
    %116 = vmatprep.subr.bf16.mxu0 0
    %117 = vmatpush1.bf16.msra.mxu0 0
    %118 = vmatprep.subr.bf16.mxu0 0
    %119 = vmatpush1.bf16.msra.mxu0 0
    %120 = vmatprep.subr.bf16.mxu0 0
    %121 = vmatpush1.bf16.msra.mxu0 0
    %122 = vmatprep.subr.bf16.mxu0 0
    %123 = vmatpush1.bf16.msra.mxu0 0
    %124 = vmatprep.subr.bf16.mxu0 0
    %125 = vmatpush1.bf16.msra.mxu0 0
    %126 = vmatprep.subr.bf16.mxu0 0
    %127 = vmatpush1.bf16.msra.mxu0 0
    %128 = vmatprep.subr.bf16.mxu0 0
    %129 = vmatpush1.bf16.msra.mxu0 0
    %130 = vmatprep.subr.bf16.mxu0 0
    %131 = vmatpush1.bf16.msra.mxu0 0
    %132 = vmatprep.subr.bf16.mxu0 0
    %133 = vmatpush1.bf16.msra.mxu0 0
    %134 = vmatprep.subr.bf16.mxu0 0
    %135 = vmatpush1.bf16.msra.mxu0 0
    %136 = vmatprep.subr.bf16.mxu0 0
    %137 = vmatpush1.bf16.msra.mxu0 0
    %138 = vmatprep.subr.bf16.mxu0 0
    %139 = vmatpush1.bf16.msra.mxu0 0
    %140 = vmatprep.subr.bf16.mxu0 0
    %141 = vmatpush1.bf16.msra.mxu0 0
    %142 = vmatprep.subr.bf16.mxu0 0
    %143 = vmatpush1.bf16.msra.mxu0 0
    %144 = vmatprep.mubr.bf16.mxu0 0
    %145 = vmatmul.mubr.bf16.gmra.mrb[0].mxu0 %v110
    %v146 = vpop.f32.mrb[0].mxu0
    %v147 = vadd.f32 %v100, %v146
    %v148 = vpop.f32.mrb[0].mxu0
    %v149 = vpop.f32.mrb[0].mxu0
    %v150 = vpop.f32.mrb[0].mxu0
    %151 = vdwg.mxu0
    %vm152 = vcmask 64512
    %153 = vst.msk [vmem:[#allocation2] sm:$0xff] %vm152, %v147
    // Predicated region
    $region22: #{tpu_custom_call.1} parent=1 // pred_check
      _
    $region23: #{tpu_custom_call.1} parent=1 // pred_check_branch
      %155 = sbr.rel (0) target = $region25
    $region24: #{tpu_custom_call.1} parent=1 // pred_region
      %s157 = ssub.s32 128, 128
      %158 = vsyncadd [#allocation3], %s157
      %s160 = sshll.u32 [#allocation2], 4
      %s161 = int_to_ptr.vmem [resolvable:$true] %s160
      %163 = dma.vmem_to_hbm [thread:$0]  %s161, 128, %s5, [#allocation3]
    $region25: #{tpu_custom_call.1} parent=1 // pred_fallthru
      _
    // Predicated region
    $region26: #{tpu_custom_call.1} parent=1 // pred_check
      _
    $region27: #{tpu_custom_call.1} parent=1 // pred_check_branch
      %165 = sbr.rel (0) target = $region29
    $region28: #{tpu_custom_call.1} parent=1 // pred_region
      %166 = dma.done [#allocation3], 128
    $region29: #{tpu_custom_call.1} parent=1 // pred_fallthru
      _
    %167 = vsyncpa [#allocation3], 1

</llo_original>
